<compile_context>
chip_gen: v5e
topology: v5e:2x2
jax: 0.10.0
libtpu: 0.0.40
codegen_flags: <defaults>
</compile_context>

<pallas_src>
import math
import jax
import jax.numpy as jnp
from jax import lax
from jax.experimental import pallas as pl
from jax.experimental.pallas import tpu as pltpu

_VOCABS = (13, 32, 7, 24)      # month, day, weekday, hour  (embed_type='fixed', freq='h')
_V_TOTAL = sum(_VOCABS)        # 76


def _round_up(n, m):
    return -(-n // m) * m


def _fixed_embedding_table(c_in, d_model):
    """FixedEmbedding weight table (sinusoidal, non-trainable)."""
    assert d_model % 2 == 0, "fixed temporal embedding assumes even d_model"
    pos = jnp.arange(c_in, dtype=jnp.float32)[:, None]
    div = jnp.exp(
        jnp.arange(0, d_model, 2, dtype=jnp.float32) * -(math.log(10000.0) / d_model)
    )
    w = jnp.zeros((c_in, d_model), dtype=jnp.float32)
    w = w.at[:, 0::2].set(jnp.sin(pos * div))
    w = w.at[:, 1::2].set(jnp.cos(pos * div))
    return w


def _pick_tile(BL, tm, align=256):
    """Clamp the row tile and keep the grid-step count even (v7x dual-TensorCore balance)."""
    tm = min(tm, BL)
    if tm == BL:
        return BL, 1
    steps = -(-BL // tm)
    if steps % 2:                                  # odd grid leaves one v7x TC idle at the tail
        steps += 1
        tm = min(BL, max(align, _round_up(-(-BL // steps), align)))
        steps = -(-BL // tm)
    return tm, steps


def embed_kernel(xw_ref, mk_ref, wf_ref, out_ref, fin_ref):
    """Per row tile: build fused input in VMEM scratch, then one MXU matmul.

    fin columns [0, K)        : circular conv1d im2col window (bf16)
    fin columns [K, K+76)     : temporal one-hot built from packed int32 marks
    fin columns [K+76, Kp)    : zero padding (matching zero rows in the weight slab)
    """
    tm, kp = fin_ref.shape
    k0 = xw_ref.shape[1]                              # 3 * c_in (static)

    packed = mk_ref[...]                              # [tm, 1] int32: month | day<<8 | wd<<16 | hr<<24
    month = (packed & 0xFF) + k0                      # -> columns [K,      K + 13)
    day = ((packed >> 8) & 0xFF) + (k0 + 13)          # -> columns [K + 13, K + 45)
    weekday = ((packed >> 16) & 0xFF) + (k0 + 45)     # -> columns [K + 45, K + 52)
    hour = ((packed >> 24) & 0xFF) + (k0 + 52)        # -> columns [K + 52, K + 76)

    col = lax.broadcasted_iota(jnp.int32, (tm, kp), 1)
    hit = (col == month) | (col == day) | (col == weekday) | (col == hour)
    fin_ref[...] = hit.astype(fin_ref.dtype)          # one-hot + zero padding
    fin_ref[:, :k0] = xw_ref[...]                     # conv window in the leading lanes

    out_ref[...] = jnp.dot(
        fin_ref[...], wf_ref[...], preferred_element_type=jnp.float32
    ).astype(out_ref.dtype)


def init_data_embedding_wo_pos(conv_w, tables):
    """One-time parameter prep: fused, padded weight slab [Kp, d_model] in bf16."""
    d_model, c_in, _ = conv_w.shape
    K = 3 * c_in
    Kp = _round_up(K + _V_TOTAL, 128)                 # 128-aligned fused contraction depth
    w_flat = jnp.transpose(conv_w, (2, 1, 0)).reshape(K, d_model)   # im2col layout (k-major, c-minor)
    tab = jnp.concatenate(tables, axis=0)                           # [76, d_model]
    wf = jnp.zeros((Kp, d_model), jnp.float32)
    wf = wf.at[:K].set(w_flat)
    wf = wf.at[K:K + _V_TOTAL].set(tab)
    return {"wf": wf.astype(jnp.bfloat16), "K": K, "Kp": Kp,
            "c_in": c_in, "d_model": d_model}


def data_embedding_wo_pos(params, x, x_mark, *, tm=2048, out_dtype=jnp.bfloat16):
    wf, K, Kp, d_model = params["wf"], params["K"], params["Kp"], params["d_model"]
    B, L, c_in = x.shape
    assert c_in == params["c_in"]
    BL = B * L

    # ---- circular conv1d(k=3, padding=1) as im2col, bf16 ----
    x_pad = jnp.concatenate([x[:, -1:, :], x, x[:, :1, :]], axis=1)             # [B, L+2, c_in]
    x_win = jnp.concatenate([x_pad[:, k:k + L, :] for k in range(3)], axis=-1)  # [B, L, 3*c_in]
    x_win = x_win.reshape(BL, K).astype(jnp.bfloat16)

    # ---- pack 4 marks into one int32 per row (8-bit fields); unpacked in-kernel ----
    m = x_mark.reshape(BL, 4).astype(jnp.int32)
    marks = (m[:, 0:1] | (m[:, 1:2] << 8) | (m[:, 2:3] << 16) | (m[:, 3:4] << 24))  # [BL, 1]

    tm, steps = _pick_tile(BL, tm)

    out = pl.pallas_call(
        embed_kernel,
        out_shape=jax.ShapeDtypeStruct((BL, d_model), out_dtype),
        grid_spec=pltpu.PrefetchScalarGridSpec(
            num_scalar_prefetch=0,
            grid=(steps,),
            in_specs=[
                pl.BlockSpec((tm, K), lambda i: (i, 0)),        # conv window tile
                pl.BlockSpec((tm, 1), lambda i: (i, 0)),        # packed int32 marks tile
                pl.BlockSpec((Kp, d_model), lambda i: (0, 0)),  # resident fused weight slab
            ],
            out_specs=pl.BlockSpec((tm, d_model), lambda i: (i, 0)),
            scratch_shapes=[pltpu.VMEM((tm, Kp), jnp.bfloat16)],
        ),
        compiler_params=pltpu.CompilerParams(
            dimension_semantics=("parallel",),
            vmem_limit_bytes=32 * 1024 * 1024,
        ),
    )(x_win, marks, wf)

    # Dropout(p=0.1): identity at inference time.
    return out.reshape(B, L, d_model)


def _reference(x, x_mark, conv_w, tables):
    """Pure-JAX reference of the PyTorch forward (eval mode), bf16 matmul operands + f32 acc."""
    B, L, c_in = x.shape
    x_pad = jnp.concatenate([x[:, -1:, :], x, x[:, :1, :]], axis=1)
    x_unf = jnp.stack([x_pad[:, k:k + L, :] for k in range(3)], axis=2)   # [B, L, 3, c_in]
    val = jnp.einsum(
        "blkc,ock->blo",
        x_unf.astype(jnp.bfloat16),
        conv_w.astype(jnp.bfloat16),
        preferred_element_type=jnp.float32,
    )
    tb = [t.astype(jnp.bfloat16).astype(jnp.float32) for t in tables]
    month, day, weekday, hour = (x_mark[..., i] for i in range(4))
    tmp = tb[0][month] + tb[1][day] + tb[2][weekday] + tb[3][hour]
    return val + tmp


if __name__ == "__main__":
    B, L, c_in, d_model = 2, 8, 4, 32

    key = jax.random.PRNGKey(0)
    k_x, k_w, k_mk, k_x2, k_mk2 = jax.random.split(key, 5)

    x = jax.random.normal(k_x, (B, L, c_in), dtype=jnp.float32)

    # temporal marks: month[0,12], day[0,31], weekday[0,6], hour[0,23]
    highs = jnp.array(list(_VOCABS), dtype=jnp.int32)
    x_mark = (jax.random.randint(k_mk, (B, L, 4), 0, 1 << 16) % highs).astype(jnp.int32)

    # Conv1d weight [d_model, c_in, 3], kaiming_normal(fan_in, leaky_relu)-like init
    fan_in = c_in * 3
    std = math.sqrt(2.0 / (1.0 + 5.0)) / math.sqrt(fan_in)
    conv_w = std * jax.random.normal(k_w, (d_model, c_in, 3), dtype=jnp.float32)

    # fixed sinusoidal embedding tables: month, day, weekday, hour
    tables = [_fixed_embedding_table(v, d_model) for v in _VOCABS]

    params = init_data_embedding_wo_pos(conv_w, tables)

    # ---- check 1: single full-extent tile (BL <= tm), bf16 output ----
    out = data_embedding_wo_pos(params, x, x_mark)
    out = jax.block_until_ready(out)
    ref = _reference(x, x_mark, conv_w, tables)
    assert out.shape == (B, L, d_model)
    # bf16 operands + bf16 output: ~0.4% relative rounding vs. f32 PyTorch module.
    assert jnp.allclose(out.astype(jnp.float32), ref, atol=3e-2, rtol=2e-2), "mismatch vs reference"

    # ---- check 2: multi-tile grid with BL % tm != 0 (partial last tile, masked writeback) ----
    B2, L2 = 2, 60                                    # BL=120, tm=64 -> 2 steps, 8-row overhang
    x2 = jax.random.normal(k_x2, (B2, L2, c_in), dtype=jnp.float32)
    x_mark2 = (jax.random.randint(k_mk2, (B2, L2, 4), 0, 1 << 16) % highs).astype(jnp.int32)
    out2 = jax.block_until_ready(data_embedding_wo_pos(params, x2, x_mark2, tm=64))
    ref2 = _reference(x2, x_mark2, conv_w, tables)
    assert out2.shape == (B2, L2, d_model)
    assert jnp.allclose(out2.astype(jnp.float32), ref2, atol=3e-2, rtol=2e-2), "mismatch (partial tile)"

    print("KERNEL_OK")
</pallas_src>

<mosaic_0001>
module attributes {stable_mosaic.version = 11 : i64} {
  func.func @embed_kernel(%arg0: i32, %arg1: memref<16x12xbf16, #tpu.memory_space<vmem>>, %arg2: memref<16x1xi32, #tpu.memory_space<vmem>>, %arg3: memref<128x32xbf16, #tpu.memory_space<vmem>>, %arg4: memref<16x32xbf16, #tpu.memory_space<vmem>>, %arg5: memref<16x128xbf16, #tpu.memory_space<vmem>>) attributes {dimension_semantics = [#tpu.dimension_semantics<parallel>], iteration_bounds = array<i64: 1>, scalar_prefetch = 0 : i64, scratch_operands = 1 : i64, tpu.core_type = #tpu.core_type<tc>, window_params = [{transform_indices = @transform_0, window_bounds = array<i64: 16, 12>}, {transform_indices = @transform_1, window_bounds = array<i64: 16, 1>}, {pipeline_mode = #tpu.pipeline_mode<synchronous>, transform_indices = @transform_2, window_bounds = array<i64: 128, 32>}, {transform_indices = @transform_3, window_bounds = array<i64: 16, 32>}]} {
    %c0 = arith.constant 0 : index
    %c0_0 = arith.constant 0 : index
    %0 = vector.load %arg2[%c0, %c0_0] : memref<16x1xi32, #tpu.memory_space<vmem>>, vector<16x1xi32>
    %c255_i32 = arith.constant 255 : i32
    %1 = vector.broadcast %c255_i32 : i32 to vector<16x1xi32>
    %2 = arith.andi %0, %1 : vector<16x1xi32>
    %c12_i32 = arith.constant 12 : i32
    %3 = vector.broadcast %c12_i32 : i32 to vector<16x1xi32>
    %4 = arith.addi %2, %3 : vector<16x1xi32>
    %c8_i32 = arith.constant 8 : i32
    %5 = vector.broadcast %c8_i32 : i32 to vector<16x1xi32>
    %6 = arith.shrsi %0, %5 : vector<16x1xi32>
    %c255_i32_1 = arith.constant 255 : i32
    %7 = vector.broadcast %c255_i32_1 : i32 to vector<16x1xi32>
    %8 = arith.andi %6, %7 : vector<16x1xi32>
    %c25_i32 = arith.constant 25 : i32
    %9 = vector.broadcast %c25_i32 : i32 to vector<16x1xi32>
    %10 = arith.addi %8, %9 : vector<16x1xi32>
    %c16_i32 = arith.constant 16 : i32
    %11 = vector.broadcast %c16_i32 : i32 to vector<16x1xi32>
    %12 = arith.shrsi %0, %11 : vector<16x1xi32>
    %c255_i32_2 = arith.constant 255 : i32
    %13 = vector.broadcast %c255_i32_2 : i32 to vector<16x1xi32>
    %14 = arith.andi %12, %13 : vector<16x1xi32>
    %c57_i32 = arith.constant 57 : i32
    %15 = vector.broadcast %c57_i32 : i32 to vector<16x1xi32>
    %16 = arith.addi %14, %15 : vector<16x1xi32>
    %c24_i32 = arith.constant 24 : i32
    %17 = vector.broadcast %c24_i32 : i32 to vector<16x1xi32>
    %18 = arith.shrsi %0, %17 : vector<16x1xi32>
    %c255_i32_3 = arith.constant 255 : i32
    %19 = vector.broadcast %c255_i32_3 : i32 to vector<16x1xi32>
    %20 = arith.andi %18, %19 : vector<16x1xi32>
    %c64_i32 = arith.constant 64 : i32
    %21 = vector.broadcast %c64_i32 : i32 to vector<16x1xi32>
    %22 = arith.addi %20, %21 : vector<16x1xi32>
    %23 = tpu.iota {dimensions = array<i32: 1>} : vector<16x128xi32>
    %24 = vector.broadcast %4 : vector<16x1xi32> to vector<16x128xi32>
    %25 = arith.cmpi eq, %23, %24 : vector<16x128xi32>
    %26 = vector.broadcast %10 : vector<16x1xi32> to vector<16x128xi32>
    %27 = arith.cmpi eq, %23, %26 : vector<16x128xi32>
    %28 = arith.ori %25, %27 : vector<16x128xi1>
    %29 = vector.broadcast %16 : vector<16x1xi32> to vector<16x128xi32>
    %30 = arith.cmpi eq, %23, %29 : vector<16x128xi32>
    %31 = arith.ori %28, %30 : vector<16x128xi1>
    %32 = vector.broadcast %22 : vector<16x1xi32> to vector<16x128xi32>
    %33 = arith.cmpi eq, %23, %32 : vector<16x128xi32>
    %34 = arith.ori %31, %33 : vector<16x128xi1>
    %35 = arith.extui %34 : vector<16x128xi1> to vector<16x128xi32>
    %36 = arith.sitofp %35 : vector<16x128xi32> to vector<16x128xf32>
    %37 = arith.truncf %36 : vector<16x128xf32> to vector<16x128xbf16>
    %c0_4 = arith.constant 0 : index
    %c0_5 = arith.constant 0 : index
    %38 = vector.load %arg5[%c0_4, %c0_5] : memref<16x128xbf16, #tpu.memory_space<vmem>>, vector<16x128xbf16>
    tpu.vector_store %arg5[%c0_4, %c0_5], %37 {strides = array<i32>} : memref<16x128xbf16, #tpu.memory_space<vmem>>, vector<16x128xbf16>,
    %c0_6 = arith.constant 0 : index
    %c0_7 = arith.constant 0 : index
    %39 = vector.load %arg1[%c0_6, %c0_7] : memref<16x12xbf16, #tpu.memory_space<vmem>>, vector<16x12xbf16>
    %c0_8 = arith.constant 0 : index
    %c0_9 = arith.constant 0 : index
    %40 = vector.load %arg5[%c0_8, %c0_9] : memref<16x128xbf16, #tpu.memory_space<vmem>>, vector<16x12xbf16>
    tpu.vector_store %arg5[%c0_8, %c0_9], %39 {strides = array<i32>} : memref<16x128xbf16, #tpu.memory_space<vmem>>, vector<16x12xbf16>,
    %c0_10 = arith.constant 0 : index
    %c0_11 = arith.constant 0 : index
    %41 = vector.load %arg5[%c0_10, %c0_11] : memref<16x128xbf16, #tpu.memory_space<vmem>>, vector<16x128xbf16>
    %c0_12 = arith.constant 0 : index
    %c0_13 = arith.constant 0 : index
    %42 = vector.load %arg3[%c0_12, %c0_13] : memref<128x32xbf16, #tpu.memory_space<vmem>>, vector<128x32xbf16>
    %cst = arith.constant dense<0.000000e+00> : vector<16x32xf32>
    %43 = tpu.matmul %41, %42, %cst {dimension_numbers = #tpu.dot_dimension_numbers<[1], [0], [0], [1], [0, 0, 1, 1], [], []>} : vector<16x128xbf16>, vector<128x32xbf16>, vector<16x32xf32> -> vector<16x32xf32>
    %44 = arith.truncf %43 : vector<16x32xf32> to vector<16x32xbf16>
    %c0_14 = arith.constant 0 : index
    %c0_15 = arith.constant 0 : index
    %45 = vector.load %arg4[%c0_14, %c0_15] : memref<16x32xbf16, #tpu.memory_space<vmem>>, vector<16x32xbf16>
    tpu.vector_store %arg4[%c0_14, %c0_15], %44 {strides = array<i32>} : memref<16x32xbf16, #tpu.memory_space<vmem>>, vector<16x32xbf16>,
    return
  }
  func.func @transform_0(%arg0: i32) -> (i32, i32) {
    %c0_i32 = arith.constant 0 : i32
    %c0_i32_0 = arith.constant 0 : i32
    return %arg0, %c0_i32 : i32, i32
  }
  func.func @transform_1(%arg0: i32) -> (i32, i32) {
    %c0_i32 = arith.constant 0 : i32
    %c0_i32_0 = arith.constant 0 : i32
    return %arg0, %c0_i32 : i32, i32
  }
  func.func @transform_2(%arg0: i32) -> (i32, i32) {
    %c0_i32 = arith.constant 0 : i32
    %c0_i32_0 = arith.constant 0 : i32
    %c0_i32_1 = arith.constant 0 : i32
    return %c0_i32, %c0_i32_0 : i32, i32
  }
  func.func @transform_3(%arg0: i32) -> (i32, i32) {
    %c0_i32 = arith.constant 0 : i32
    %c0_i32_0 = arith.constant 0 : i32
    return %arg0, %c0_i32 : i32, i32
  }
}

</mosaic_0001>

<llo_original>
// kernel: tpu_custom_call.1
$region0: #{tpu_custom_call.1}
  #allocation0 [shape = 'u32[]', space=smem, size = 0x4, offset = 0x4, fixed_abs, tag = 'smem constant byte address 0x4 - core index']
  #allocation1 [shape = 'u32[72,128]{1,0:T(1,128)}', space=vmem, size = 0x9000, scoped, tag = 'internal scratch']
  #allocation2 [shape = 'bf16[16,128]{1,0:T(8,128)(2,1)}', space=vmem, size = 0x1000, scoped, tag = 'scratch operand']
  %s0 = inlined_call_operand.vmem [shape: bf16[16,12], index: 0, kind: input, shape index: {}]
  %s1 = inlined_call_operand.vmem [shape: s32[16,1], index: 1, kind: input, shape index: {}]
  %s2 = inlined_call_operand.vmem [shape: bf16[128,32], index: 2, kind: input, shape index: {}]
  %s3 = inlined_call_operand.hbm [shape: bf16[16,32], index: 3, kind: output, shape index: {}]
  %s4 = sld [smem:[#allocation0]]
  $region22: #{tpu_custom_call.1} parent=0
    _
  %s6 = ssub.s32 1, %s4
  %s7 = scalar_select 0, %s6, %s4
  $region1: #{tpu_custom_call.1} parent=0
    #allocation3 [shape = 'u8[4096]{0}', space=vmem, size = 0x1000, scoped, tag = 'output window, operand 0, single buffered']
    #allocation4 [shape = 's32[1]{0}', space=sflag, size = 0x4, scoped, tag = 'scoped memory for tpu_custom_call.1']
    %8 = vsyncpa [#allocation4], 0
    // Predicated region
    $region2: #{tpu_custom_call.1} parent=1 // pred_check
      _
    $region3: #{tpu_custom_call.1} parent=1 // pred_check_branch
      %10 = sbr.rel (0) target = $region5
    $region4: #{tpu_custom_call.1} parent=1 // pred_region
      _
    $region5: #{tpu_custom_call.1} parent=1 // pred_fallthru
      _
    // Predicated region
    $region6: #{tpu_custom_call.1} parent=1 // pred_check
      _
    $region7: #{tpu_custom_call.1} parent=1 // pred_check_branch
      %12 = sbr.rel (0) target = $region9
    $region8: #{tpu_custom_call.1} parent=1 // pred_region
      _
    $region9: #{tpu_custom_call.1} parent=1 // pred_fallthru
      _
    // Predicated region
    $region10: #{tpu_custom_call.1} parent=1 // pred_check
      _
    $region11: #{tpu_custom_call.1} parent=1 // pred_check_branch
      %14 = sbr.rel (0) target = $region13
    $region12: #{tpu_custom_call.1} parent=1 // pred_region
      _
    $region13: #{tpu_custom_call.1} parent=1 // pred_fallthru
      _
    %v15 = vld [vmem:[%s1] sm:$0xff]
    %v16 = vld [vmem:[%s1 + $0x8] sm:$0xff]
    %v17 = vand.u32 %v15, 255
    %v18 = vand.u32 %v16, 255
    %v19 = vadd.s32 %v17, 12
    %v20 = vadd.s32 %v18, 12
    %v21 = vshra.s32 %v15, 8
    %v22 = vshra.s32 %v16, 8
    %v23 = vand.u32 %v21, 255
    %v24 = vand.u32 %v22, 255
    %v25 = vadd.s32 %v23, 25
    %v26 = vadd.s32 %v24, 25
    %v27 = vshra.s32 %v15, 16
    %v28 = vshra.s32 %v16, 16
    %v29 = vand.u32 %v27, 255
    %v30 = vand.u32 %v28, 255
    %v31 = vadd.s32 %v29, 57
    %v32 = vadd.s32 %v30, 57
    %v33 = vshra.s32 %v15, 24
    %v34 = vshra.s32 %v16, 24
    %v35 = vand.u32 %v33, 255
    %v36 = vand.u32 %v34, 255
    %v37 = vadd.s32 %v35, 64
    %v38 = vadd.s32 %v36, 64
    %v39 = vlaneseq
    %v40 = vand.u32 %v39, 127
    %41 = vset.pattern.permute.xlu0 0
    %42 = vperm.xlu0 %41, %v19
    %v43 = vpop.permute.xlu0 %42
    %44 = vset.pattern.permute.xlu0 0
    %45 = vperm.xlu0 %44, %v20
    %v46 = vpop.permute.xlu0 %45
    %vm47 = vcmp.eq.s32.totalorder %v40, %v43
    %vm48 = vcmp.eq.s32.totalorder %v40, %v46
    %49 = vset.pattern.permute.xlu0 0
    %50 = vperm.xlu0 %49, %v25
    %v51 = vpop.permute.xlu0 %50
    %52 = vset.pattern.permute.xlu0 0
    %53 = vperm.xlu0 %52, %v26
    %v54 = vpop.permute.xlu0 %53
    %vm55 = vcmp.eq.s32.totalorder %v40, %v51
    %vm56 = vcmp.eq.s32.totalorder %v40, %v54
    %vm57 = vmor %vm47, %vm55
    %vm58 = vmor %vm48, %vm56
    %59 = vset.pattern.permute.xlu0 0
    %60 = vperm.xlu0 %59, %v31
    %v61 = vpop.permute.xlu0 %60
    %62 = vset.pattern.permute.xlu0 0
    %63 = vperm.xlu0 %62, %v32
    %v64 = vpop.permute.xlu0 %63
    %vm65 = vcmp.eq.s32.totalorder %v40, %v61
    %vm66 = vcmp.eq.s32.totalorder %v40, %v64
    %vm67 = vmor %vm57, %vm65
    %vm68 = vmor %vm58, %vm66
    %69 = vset.pattern.permute.xlu0 0
    %70 = vperm.xlu0 %69, %v37
    %v71 = vpop.permute.xlu0 %70
    %72 = vset.pattern.permute.xlu0 0
    %73 = vperm.xlu0 %72, %v38
    %v74 = vpop.permute.xlu0 %73
    %vm75 = vcmp.eq.s32.totalorder %v40, %v71
    %vm76 = vcmp.eq.s32.totalorder %v40, %v74
    %vm77 = vmor %vm67, %vm75
    %vm78 = vmor %vm68, %vm76
    %v79 = vsel %vm77, 1, 0
    %v80 = vsel %vm78, 1, 0
    %v81 = vcvt.s32.f32 %v79
    %v82 = vcvt.s32.f32 %v80
    %v83 = vpack.c.bf16 %v81, %v81
    %v84 = vpack.c.bf16 %v82, %v82
    %85 = vst [vmem:[#allocation2] sm:$0xf] %v83
    %86 = vst [vmem:[#allocation2 + $0x4] sm:$0xf] %v84
    %v87 = vld [vmem:[%s0] sm:$0xf]
    %v88 = vld [vmem:[%s0 + $0x4] sm:$0xf]
    %vm89 = vcmask 93184
    %90 = vst.msk [vmem:[#allocation2] sm:$0xf] %vm89, %v87
    %91 = vst.msk [vmem:[#allocation2 + $0x4] sm:$0xf] %vm89, %v88
    %v92 = vld [vmem:[#allocation2] sm:$0xf]
    %v93 = vld [vmem:[#allocation2 + $0x4] sm:$0xf]
    %v94 = vld [vmem:[%s2] sm:$0xf]
    %v95 = vld [vmem:[%s2 + $0x4] sm:$0xf]
    %v96 = vld [vmem:[%s2 + $0x8] sm:$0xf]
    %v97 = vld [vmem:[%s2 + $0xc] sm:$0xf]
    %v98 = vld [vmem:[%s2 + $0x10] sm:$0xf]
    %v99 = vld [vmem:[%s2 + $0x14] sm:$0xf]
    %v100 = vld [vmem:[%s2 + $0x18] sm:$0xf]
    %v101 = vld [vmem:[%s2 + $0x1c] sm:$0xf]
    %v102 = vld [vmem:[%s2 + $0x20] sm:$0xf]
    %v103 = vld [vmem:[%s2 + $0x24] sm:$0xf]
    %v104 = vld [vmem:[%s2 + $0x28] sm:$0xf]
    %v105 = vld [vmem:[%s2 + $0x2c] sm:$0xf]
    %v106 = vld [vmem:[%s2 + $0x30] sm:$0xf]
    %v107 = vld [vmem:[%s2 + $0x34] sm:$0xf]
    %v108 = vld [vmem:[%s2 + $0x38] sm:$0xf]
    %v109 = vld [vmem:[%s2 + $0x3c] sm:$0xf]
    %v112 = vunpack.c.l.b16 %v92
    %v113 = vunpack.c.l.b16 %v93
    %v114 = vpack.c.b16 %v113, %v112
    %v132 = vunpack.c.l.b16 %v94
    %v133 = vunpack.c.l.b16 %v95
    %v134 = vunpack.c.l.b16 %v96
    %v135 = vunpack.c.l.b16 %v97
    %v136 = vunpack.c.l.b16 %v98
    %v137 = vunpack.c.l.b16 %v99
    %v138 = vunpack.c.l.b16 %v100
    %v139 = vunpack.c.l.b16 %v101
    %v140 = vunpack.c.l.b16 %v102
    %v141 = vunpack.c.l.b16 %v103
    %v142 = vunpack.c.l.b16 %v104
    %v143 = vunpack.c.l.b16 %v105
    %v144 = vunpack.c.l.b16 %v106
    %v145 = vunpack.c.l.b16 %v107
    %v146 = vunpack.c.l.b16 %v108
    %v147 = vunpack.c.l.b16 %v109
    %v148 = vpack.c.b16 %v133, %v132
    %v149 = vpack.c.b16 %v135, %v134
    %v150 = vpack.c.b16 %v137, %v136
    %v151 = vpack.c.b16 %v139, %v138
    %v152 = vpack.c.b16 %v141, %v140
    %v153 = vpack.c.b16 %v143, %v142
    %v154 = vpack.c.b16 %v145, %v144
    %v155 = vpack.c.b16 %v147, %v146
    %164 = vmatpush.bf16.msra.mxu0 %v155
    %165 = vmatpush.bf16.msra.mxu0 %v154
    %166 = vmatpush.bf16.msra.mxu0 %v153
    %167 = vmatpush.bf16.msra.mxu0 %v152
    %168 = vmatpush.bf16.msra.mxu0 %v151
    %169 = vmatpush.bf16.msra.mxu0 %v150
    %170 = vmatpush.bf16.msra.mxu0 %v149
    %171 = vmatpush.bf16.msra.mxu0 %v148
    %172 = vmatmul.bf16.gmra.mxu0 %v114
    %v173 = vpop.f32.mrf.mxu0
    %v174 = vadd.f32 0.0, %v173
    %v175 = vpop.f32.mrf.mxu0
    %v176 = vadd.f32 0.0, %v175
    %177 = vdwg.mxu0
    %v178 = vpack.c.bf16 %v174, %v174
    %v179 = vpack.c.bf16 %v176, %v176
    %vm180 = vcmask 257024
    %181 = vst.msk [vmem:[#allocation3] sm:$0xf] %vm180, %v178
    %182 = vst.msk [vmem:[#allocation3 + $0x4] sm:$0xf] %vm180, %v179
    // Predicated region
    $region14: #{tpu_custom_call.1} parent=1 // pred_check
      _
    $region15: #{tpu_custom_call.1} parent=1 // pred_check_branch
      %184 = sbr.rel (0) target = $region17
    $region16: #{tpu_custom_call.1} parent=1 // pred_region
      %186 = vsyncadd [#allocation4], 0
      %s187 = sshll.u32 [#allocation3], 4
      %s188 = int_to_ptr.vmem [resolvable:$true] %s187
      %s189 = sshll.u32 %s3, 4
      %s190 = int_to_ptr.hbm [resolvable:$true] %s189
      %195 = dma.vmem_to_hbm [thread:$0]  %s188, 128, %s190, [#allocation4], 64, 64, 4
    $region17: #{tpu_custom_call.1} parent=1 // pred_fallthru
      _
    // Predicated region
    $region18: #{tpu_custom_call.1} parent=1 // pred_check
      _
    $region19: #{tpu_custom_call.1} parent=1 // pred_check_branch
      %197 = sbr.rel (0) target = $region21
    $region20: #{tpu_custom_call.1} parent=1 // pred_region
      %199 = dma.done [#allocation4], 128
    $region21: #{tpu_custom_call.1} parent=1 // pred_fallthru
      _
    %200 = vsyncpa [#allocation4], 1

</llo_original>
